<compile_context>
chip_gen: v5e
topology: v5e:2x2
jax: 0.10.0
libtpu: 0.0.40
codegen_flags: <defaults>
</compile_context>

<pallas_src>
import jax
import jax.numpy as jnp
from jax.experimental import pallas as pl
from jax.experimental.pallas import tpu as pltpu

_MIB = 1024 * 1024


def _physical_vmem_bytes():
    """Per-core physical VMEM (128 MiB v5e/v6e, 64 MiB v7x); conservative fallback."""
    try:
        info = pltpu.get_tpu_info()
        for name in ("vmem_capacity_bytes", "vmem_size_bytes", "vmem_bytes"):
            v = getattr(info, name, None)
            if v:
                return int(v)
    except Exception:
        pass
    return 64 * _MIB  # assume the smallest (v7x) if the query is unavailable


def _choose_bt(batch, per_row_bytes, budget_bytes):
    """Rows per grid step: as many as fit the VMEM budget, with an even number
    of grid steps so v7x's two TensorCores split the 'parallel' axis evenly."""
    max_fit = max(1, int(budget_bytes // max(per_row_bytes, 1)))
    if max_fit >= batch:
        return batch
    steps = -(-batch // max_fit)          # ceil
    if steps % 2:                         # even step count -> balanced megacore split
        steps += 1
    return max(1, -(-batch // steps))


# ---------------------------------------------------------------------------
# Fused kernel: 1x1-conv attention + softmax + distance + per-row select.
# ---------------------------------------------------------------------------
def _fused_exchange_kernel(w_ref, b_ref, x1_ref, x2_ref, o1_ref, o2_ref):
    x1 = x1_ref[...]                               # (bt, C, HW) native dtype
    x2 = x2_ref[...]
    w = w_ref[...][None, :, :].astype(x1.dtype)    # (1, C, 1)
    b = b_ref[...]                                 # (1, 1) f32

    # 1x1-conv logits, accumulated in f32 without a whole-block f32 copy.
    a1 = jnp.sum(x1 * w, axis=1, dtype=jnp.float32) + b    # (bt, HW)
    a2 = jnp.sum(x2 * w, axis=1, dtype=jnp.float32) + b

    def _softmax(a):
        m = jnp.max(a, axis=-1, keepdims=True)
        e = jnp.exp(a - m)
        s = jnp.sum(e, axis=-1, keepdims=True)
        return e * pl.reciprocal(s, approx=True)           # divide on the EUP slot

    diff = _softmax(a1) - _softmax(a2)
    # Squared L2 distance: sqrt is monotonic, so dropping it leaves the strict
    # `<` comparison below unchanged.
    d2 = jnp.sum(diff * diff, axis=-1, keepdims=True)      # (bt, 1)

    # torch.median(distance, dim=1, keepdim=True) over a size-1 dim returns the
    # value itself, so each row's distance is compared against itself.
    med2 = d2
    ex = (d2 < med2)[:, :, None]                            # (bt, 1, 1) bool

    o1_ref[...] = jnp.where(ex, x2, x1)
    o2_ref[...] = jnp.where(ex, x1, x2)


# ---------------------------------------------------------------------------
# Module forward.
# ---------------------------------------------------------------------------
def learnable_spatial_exchange(x1, x2, weight, bias):
    """weight: (1, C, 1, 1) 1x1-conv weight, bias: (1,).  x1, x2: (B, C, H, W)."""
    B, C, H, W = x1.shape
    HW = H * W
    itemsize = jnp.dtype(x1.dtype).itemsize

    w = weight.reshape(C, 1).astype(jnp.float32)
    b = bias.reshape(1, 1).astype(jnp.float32)
    x1r = x1.reshape(B, C, HW)            # one (B, C, HW) layout end-to-end
    x2r = x2.reshape(B, C, HW)

    # VMEM sizing: 4 tensor streams x 2 pipeline buffers + f32 row temporaries.
    per_row_bytes = 8 * C * HW * itemsize + 10 * HW * 4
    phys = _physical_vmem_bytes()
    bt = _choose_bt(B, per_row_bytes, phys // 2)
    need = per_row_bytes * bt + 2 * _MIB
    vmem_limit = int(min(phys * 3 // 4, max(need, 16 * _MIB)))
    grid = (pl.cdiv(B, bt),)

    o1, o2 = pl.pallas_call(
        _fused_exchange_kernel,
        out_shape=(
            jax.ShapeDtypeStruct((B, C, HW), x1.dtype),
            jax.ShapeDtypeStruct((B, C, HW), x2.dtype),
        ),
        grid_spec=pltpu.PrefetchScalarGridSpec(
            num_scalar_prefetch=0,
            grid=grid,
            in_specs=[
                pl.BlockSpec((C, 1), lambda i: (0, 0)),           # conv weight
                pl.BlockSpec((1, 1), lambda i: (0, 0)),           # conv bias
                pl.BlockSpec((bt, C, HW), lambda i: (i, 0, 0)),   # x1 block
                pl.BlockSpec((bt, C, HW), lambda i: (i, 0, 0)),   # x2 block
            ],
            out_specs=[
                pl.BlockSpec((bt, C, HW), lambda i: (i, 0, 0)),
                pl.BlockSpec((bt, C, HW), lambda i: (i, 0, 0)),
            ],
        ),
        compiler_params=pltpu.CompilerParams(
            dimension_semantics=("parallel",),
            vmem_limit_bytes=vmem_limit,
        ),
    )(w, b, x1r, x2r)

    return o1.reshape(B, C, H, W), o2.reshape(B, C, H, W)


# ---------------------------------------------------------------------------
# Pure-JAX reference of the PyTorch module (for verification).
# ---------------------------------------------------------------------------
def _reference(x1, x2, weight, bias):
    B, C, H, W = x1.shape
    w = weight.reshape(1, C, 1, 1)

    def att(x):
        a = jnp.sum(x * w, axis=1) + bias[0]                 # (B, H, W)
        return jax.nn.softmax(a.reshape(B, -1), axis=1)

    a1, a2 = att(x1), att(x2)
    dist = jnp.sqrt(jnp.sum((a1 - a2) ** 2, axis=1, keepdims=True))
    med = jnp.median(dist, axis=1, keepdims=True)
    ex = (dist < med).reshape(B, 1, 1, 1)
    return jnp.where(ex, x2, x1), jnp.where(ex, x1, x2)


if __name__ == "__main__":
    B, C, H, W = 2, 4, 16, 16
    key = jax.random.PRNGKey(0)
    k1, k2, kw, kb = jax.random.split(key, 4)

    x1 = jax.random.normal(k1, (B, C, H, W), dtype=jnp.float32)
    x2 = jax.random.normal(k2, (B, C, H, W), dtype=jnp.float32)

    # Deterministic Conv2d(C, 1, kernel_size=1) parameter init
    # (kaiming-uniform style bound: 1/sqrt(fan_in), fan_in = C).
    bound = 1.0 / jnp.sqrt(jnp.float32(C))
    conv_w = jax.random.uniform(kw, (1, C, 1, 1), minval=-bound, maxval=bound,
                                dtype=jnp.float32)
    conv_b = jax.random.uniform(kb, (1,), minval=-bound, maxval=bound,
                                dtype=jnp.float32)

    out1, out2 = learnable_spatial_exchange(x1, x2, conv_w, conv_b)
    jax.block_until_ready((out1, out2))

    ref1, ref2 = _reference(x1, x2, conv_w, conv_b)
    assert jnp.allclose(out1, ref1) and jnp.allclose(out2, ref2)
    # Median of a size-1 dim equals the value itself, so the strict `<` is
    # always False and the outputs must equal the inputs exactly.
    assert jnp.allclose(out1, x1) and jnp.allclose(out2, x2)
    print("KERNEL_OK")
</pallas_src>

<mosaic_0001>
module attributes {stable_mosaic.version = 11 : i64} {
  func.func @_fused_exchange_kernel(%arg0: i32, %arg1: memref<4x1xf32, #tpu.memory_space<vmem>>, %arg2: memref<1x1xf32, #tpu.memory_space<vmem>>, %arg3: memref<2x4x256xf32, #tpu.memory_space<vmem>>, %arg4: memref<2x4x256xf32, #tpu.memory_space<vmem>>, %arg5: memref<2x4x256xf32, #tpu.memory_space<vmem>>, %arg6: memref<2x4x256xf32, #tpu.memory_space<vmem>>) attributes {dimension_semantics = [#tpu.dimension_semantics<parallel>], iteration_bounds = array<i64: 1>, scalar_prefetch = 0 : i64, scratch_operands = 0 : i64, tpu.core_type = #tpu.core_type<tc>, window_params = [{pipeline_mode = #tpu.pipeline_mode<synchronous>, transform_indices = @transform_0, window_bounds = array<i64: 4, 1>}, {pipeline_mode = #tpu.pipeline_mode<synchronous>, transform_indices = @transform_1, window_bounds = array<i64: 1, 1>}, {transform_indices = @transform_2, window_bounds = array<i64: 2, 4, 256>}, {transform_indices = @transform_3, window_bounds = array<i64: 2, 4, 256>}, {transform_indices = @transform_4, window_bounds = array<i64: 2, 4, 256>}, {transform_indices = @transform_5, window_bounds = array<i64: 2, 4, 256>}]} {
    %c0 = arith.constant 0 : index
    %c0_0 = arith.constant 0 : index
    %c0_1 = arith.constant 0 : index
    %0 = vector.load %arg3[%c0, %c0_0, %c0_1] : memref<2x4x256xf32, #tpu.memory_space<vmem>>, vector<2x4x256xf32>
    %c0_2 = arith.constant 0 : index
    %c0_3 = arith.constant 0 : index
    %c0_4 = arith.constant 0 : index
    %1 = vector.load %arg4[%c0_2, %c0_3, %c0_4] : memref<2x4x256xf32, #tpu.memory_space<vmem>>, vector<2x4x256xf32>
    %c0_5 = arith.constant 0 : index
    %c0_6 = arith.constant 0 : index
    %2 = vector.load %arg1[%c0_5, %c0_6] : memref<4x1xf32, #tpu.memory_space<vmem>>, vector<4x1xf32>
    %3 = vector.shape_cast %2 : vector<4x1xf32> to vector<1x4x1xf32>
    %c0_7 = arith.constant 0 : index
    %c0_8 = arith.constant 0 : index
    %4 = vector.load %arg2[%c0_7, %c0_8] : memref<1x1xf32, #tpu.memory_space<vmem>>, vector<1x1xf32>
    %5 = vector.broadcast %3 : vector<1x4x1xf32> to vector<2x4x256xf32>
    %6 = arith.mulf %0, %5 : vector<2x4x256xf32>
    %cst = arith.constant dense<0.000000e+00> : vector<2x256xf32>
    %7 = vector.multi_reduction <add>, %6, %cst [1] : vector<2x4x256xf32> to vector<2x256xf32>
    %8 = vector.broadcast %4 : vector<1x1xf32> to vector<2x256xf32>
    %9 = arith.addf %7, %8 : vector<2x256xf32>
    %10 = vector.broadcast %3 : vector<1x4x1xf32> to vector<2x4x256xf32>
    %11 = arith.mulf %1, %10 : vector<2x4x256xf32>
    %cst_9 = arith.constant dense<0.000000e+00> : vector<2x256xf32>
    %12 = vector.multi_reduction <add>, %11, %cst_9 [1] : vector<2x4x256xf32> to vector<2x256xf32>
    %13 = vector.broadcast %4 : vector<1x1xf32> to vector<2x256xf32>
    %14 = arith.addf %12, %13 : vector<2x256xf32>
    %cst_10 = arith.constant dense<0xFF800000> : vector<2xf32>
    %15 = vector.multi_reduction <maximumf>, %9, %cst_10 [1] : vector<2x256xf32> to vector<2xf32>
    %16 = vector.shape_cast %15 : vector<2xf32> to vector<2x1xf32>
    %17 = vector.broadcast %16 : vector<2x1xf32> to vector<2x256xf32>
    %18 = arith.subf %9, %17 : vector<2x256xf32>
    %19 = math.exp %18 : vector<2x256xf32>
    %cst_11 = arith.constant dense<0.000000e+00> : vector<2xf32>
    %20 = vector.multi_reduction <add>, %19, %cst_11 [1] : vector<2x256xf32> to vector<2xf32>
    %21 = vector.shape_cast %20 : vector<2xf32> to vector<2x1xf32>
    %22 = tpu.reciprocal %21 {approx = true} : vector<2x1xf32> -> vector<2x1xf32>
    %23 = vector.broadcast %22 : vector<2x1xf32> to vector<2x256xf32>
    %24 = arith.mulf %19, %23 : vector<2x256xf32>
    %cst_12 = arith.constant dense<0xFF800000> : vector<2xf32>
    %25 = vector.multi_reduction <maximumf>, %14, %cst_12 [1] : vector<2x256xf32> to vector<2xf32>
    %26 = vector.shape_cast %25 : vector<2xf32> to vector<2x1xf32>
    %27 = vector.broadcast %26 : vector<2x1xf32> to vector<2x256xf32>
    %28 = arith.subf %14, %27 : vector<2x256xf32>
    %29 = math.exp %28 : vector<2x256xf32>
    %cst_13 = arith.constant dense<0.000000e+00> : vector<2xf32>
    %30 = vector.multi_reduction <add>, %29, %cst_13 [1] : vector<2x256xf32> to vector<2xf32>
    %31 = vector.shape_cast %30 : vector<2xf32> to vector<2x1xf32>
    %32 = tpu.reciprocal %31 {approx = true} : vector<2x1xf32> -> vector<2x1xf32>
    %33 = vector.broadcast %32 : vector<2x1xf32> to vector<2x256xf32>
    %34 = arith.mulf %29, %33 : vector<2x256xf32>
    %35 = arith.subf %24, %34 : vector<2x256xf32>
    %36 = arith.mulf %35, %35 : vector<2x256xf32>
    %cst_14 = arith.constant dense<0.000000e+00> : vector<2xf32>
    %37 = vector.multi_reduction <add>, %36, %cst_14 [1] : vector<2x256xf32> to vector<2xf32>
    %38 = vector.shape_cast %37 : vector<2xf32> to vector<2x1xf32>
    %39 = arith.cmpf olt, %38, %38 : vector<2x1xf32>
    %40 = vector.shape_cast %39 : vector<2x1xi1> to vector<2x1x1xi1>
    %41 = vector.shape_cast %40 : vector<2x1x1xi1> to vector<2x1x1xi1>
    %42 = vector.broadcast %41 : vector<2x1x1xi1> to vector<2x4x256xi1>
    %43 = arith.select %42, %1, %0 : vector<2x4x256xi1>, vector<2x4x256xf32>
    %c0_15 = arith.constant 0 : index
    %c0_16 = arith.constant 0 : index
    %c0_17 = arith.constant 0 : index
    %44 = vector.load %arg5[%c0_15, %c0_16, %c0_17] : memref<2x4x256xf32, #tpu.memory_space<vmem>>, vector<2x4x256xf32>
    tpu.vector_store %arg5[%c0_15, %c0_16, %c0_17], %43 {strides = array<i32>} : memref<2x4x256xf32, #tpu.memory_space<vmem>>, vector<2x4x256xf32>,
    %45 = vector.shape_cast %40 : vector<2x1x1xi1> to vector<2x1x1xi1>
    %46 = vector.broadcast %45 : vector<2x1x1xi1> to vector<2x4x256xi1>
    %47 = arith.select %46, %0, %1 : vector<2x4x256xi1>, vector<2x4x256xf32>
    %c0_18 = arith.constant 0 : index
    %c0_19 = arith.constant 0 : index
    %c0_20 = arith.constant 0 : index
    %48 = vector.load %arg6[%c0_18, %c0_19, %c0_20] : memref<2x4x256xf32, #tpu.memory_space<vmem>>, vector<2x4x256xf32>
    tpu.vector_store %arg6[%c0_18, %c0_19, %c0_20], %47 {strides = array<i32>} : memref<2x4x256xf32, #tpu.memory_space<vmem>>, vector<2x4x256xf32>,
    return
  }
  func.func @transform_0(%arg0: i32) -> (i32, i32) {
    %c0_i32 = arith.constant 0 : i32
    %c0_i32_0 = arith.constant 0 : i32
    %c0_i32_1 = arith.constant 0 : i32
    return %c0_i32, %c0_i32_0 : i32, i32
  }
  func.func @transform_1(%arg0: i32) -> (i32, i32) {
    %c0_i32 = arith.constant 0 : i32
    %c0_i32_0 = arith.constant 0 : i32
    %c0_i32_1 = arith.constant 0 : i32
    return %c0_i32, %c0_i32_0 : i32, i32
  }
  func.func @transform_2(%arg0: i32) -> (i32, i32, i32) {
    %c0_i32 = arith.constant 0 : i32
    %c0_i32_0 = arith.constant 0 : i32
    %c0_i32_1 = arith.constant 0 : i32
    return %arg0, %c0_i32, %c0_i32_0 : i32, i32, i32
  }
  func.func @transform_3(%arg0: i32) -> (i32, i32, i32) {
    %c0_i32 = arith.constant 0 : i32
    %c0_i32_0 = arith.constant 0 : i32
    %c0_i32_1 = arith.constant 0 : i32
    return %arg0, %c0_i32, %c0_i32_0 : i32, i32, i32
  }
  func.func @transform_4(%arg0: i32) -> (i32, i32, i32) {
    %c0_i32 = arith.constant 0 : i32
    %c0_i32_0 = arith.constant 0 : i32
    %c0_i32_1 = arith.constant 0 : i32
    return %arg0, %c0_i32, %c0_i32_0 : i32, i32, i32
  }
  func.func @transform_5(%arg0: i32) -> (i32, i32, i32) {
    %c0_i32 = arith.constant 0 : i32
    %c0_i32_0 = arith.constant 0 : i32
    %c0_i32_1 = arith.constant 0 : i32
    return %arg0, %c0_i32, %c0_i32_0 : i32, i32, i32
  }
}

</mosaic_0001>

<llo_original>
// kernel: tpu_custom_call.1
$region0: #{tpu_custom_call.1}
  #allocation0 [shape = 'u32[]', space=smem, size = 0x4, offset = 0x4, fixed_abs, tag = 'smem constant byte address 0x4 - core index']
  #allocation1 [shape = 'u32[72,128]{1,0:T(1,128)}', space=vmem, size = 0x9000, scoped, tag = 'internal scratch']
  #allocation2 [shape = 'f32[1,1]{1,0:T(1,128)S(1)}', space=vmem, size = 0x200, scoped, tag = 'scoped memory for tpu_custom_call.1']
  %s0 = inlined_call_operand.vmem [shape: f32[4,1], index: 0, kind: input, shape index: {}]
  %s1 = inlined_call_operand.<no memory space> [shape: f32[1,1], index: 1, kind: input, shape index: {}]
  %s2 = inlined_call_operand.hbm [shape: f32[2,4,256], index: 2, kind: input, shape index: {}]
  %s3 = inlined_call_operand.hbm [shape: f32[2,4,256], index: 3, kind: input, shape index: {}]
  %s4 = inlined_call_operand.hbm [shape: f32[2,4,256], index: 4, kind: output, shape index: {0}]
  %s5 = inlined_call_operand.hbm [shape: f32[2,4,256], index: 5, kind: output, shape index: {1}]
  %6 = xla_tuple %s4, %s5
  %s7 = sld [smem:[#allocation0]]
  $region42: #{tpu_custom_call.1} parent=0
    _
  %s9 = ssub.s32 1, %s7
  %s10 = scalar_select 0, %s9, %s7
  %v11 = vstv %s1
  %12 = vst [vmem:[#allocation2] sm:$0x1] %v11
  $region1: #{tpu_custom_call.1} parent=0
    #allocation3 [shape = 'u8[8192]{0}', space=vmem, size = 0x2000, scoped, tag = 'input window, operand 2, single buffered']
    #allocation4 [shape = 's32[1]{0}', space=sflag, size = 0x4, scoped, tag = 'scoped memory for tpu_custom_call.1']
    #allocation5 [shape = 's32[1]{0}', space=sflag, size = 0x4, scoped, tag = 'scoped memory for tpu_custom_call.1']
    #allocation6 [shape = 'u8[8192]{0}', space=vmem, size = 0x2000, scoped, tag = 'input window, operand 3, single buffered']
    #allocation7 [shape = 's32[1]{0}', space=sflag, size = 0x4, scoped, tag = 'scoped memory for tpu_custom_call.1']
    #allocation8 [shape = 'u8[8192]{0}', space=vmem, size = 0x2000, scoped, tag = 'output window, operand 0, single buffered']
    #allocation9 [shape = 'u8[8192]{0}', space=vmem, size = 0x2000, scoped, tag = 'output window, operand 1, single buffered']
    #allocation10 [shape = 's32[1]{0}', space=sflag, size = 0x4, scoped, tag = 'scoped memory for tpu_custom_call.1']
    %13 = vsyncpa [#allocation4], 0
    %14 = vsyncpa [#allocation7], 0
    %15 = vsyncpa [#allocation5], 0
    %16 = vsyncpa [#allocation10], 0
    // Predicated region
    $region2: #{tpu_custom_call.1} parent=1 // pred_check
      _
    $region3: #{tpu_custom_call.1} parent=1 // pred_check_branch
      %18 = sbr.rel (0) target = $region5
    $region4: #{tpu_custom_call.1} parent=1 // pred_region
      _
    $region5: #{tpu_custom_call.1} parent=1 // pred_fallthru
      _
    // Predicated region
    $region6: #{tpu_custom_call.1} parent=1 // pred_check
      _
    $region7: #{tpu_custom_call.1} parent=1 // pred_check_branch
      %20 = sbr.rel (0) target = $region9
    $region8: #{tpu_custom_call.1} parent=1 // pred_region
      _
    $region9: #{tpu_custom_call.1} parent=1 // pred_fallthru
      _
    // Predicated region
    $region10: #{tpu_custom_call.1} parent=1 // pred_check
      _
    $region11: #{tpu_custom_call.1} parent=1 // pred_check_branch
      %22 = sbr.rel (0) target = $region13
    $region12: #{tpu_custom_call.1} parent=1 // pred_region
      %24 = vsyncadd [#allocation4], 0
      %s25 = sshll.u32 %s2, 4
      %s26 = int_to_ptr.hbm [resolvable:$true] %s25
      %s27 = sshll.u32 [#allocation3], 4
      %s28 = int_to_ptr.vmem [resolvable:$true] %s27
      %33 = dma.hbm_to_vmem [thread:$0]  %s26, 256, %s28, [#allocation4], 128, 128, 8
    $region13: #{tpu_custom_call.1} parent=1 // pred_fallthru
      _
    // Predicated region
    $region14: #{tpu_custom_call.1} parent=1 // pred_check
      _
    $region15: #{tpu_custom_call.1} parent=1 // pred_check_branch
      %35 = sbr.rel (0) target = $region17
    $region16: #{tpu_custom_call.1} parent=1 // pred_region
      %37 = vsyncadd [#allocation7], 0
      %s38 = sshll.u32 %s3, 4
      %s39 = int_to_ptr.hbm [resolvable:$true] %s38
      %s40 = sshll.u32 [#allocation6], 4
      %s41 = int_to_ptr.vmem [resolvable:$true] %s40
      %46 = dma.hbm_to_vmem [thread:$0]  %s39, 256, %s41, [#allocation7], 128, 128, 8
    $region17: #{tpu_custom_call.1} parent=1 // pred_fallthru
      _
    // Predicated region
    $region18: #{tpu_custom_call.1} parent=1 // pred_check
      _
    $region19: #{tpu_custom_call.1} parent=1 // pred_check_branch
      %48 = sbr.rel (0) target = $region21
    $region20: #{tpu_custom_call.1} parent=1 // pred_region
      %50 = dma.done [#allocation4], 256
    $region21: #{tpu_custom_call.1} parent=1 // pred_fallthru
      _
    // Predicated region
    $region22: #{tpu_custom_call.1} parent=1 // pred_check
      _
    $region23: #{tpu_custom_call.1} parent=1 // pred_check_branch
      %52 = sbr.rel (0) target = $region25
    $region24: #{tpu_custom_call.1} parent=1 // pred_region
      %54 = dma.done [#allocation7], 256
    $region25: #{tpu_custom_call.1} parent=1 // pred_fallthru
      _
    %v55 = vld [vmem:[#allocation3] sm:$0xff]
    %v56 = vld [vmem:[#allocation3 + $0x8] sm:$0xff]
    %v57 = vld [vmem:[#allocation6] sm:$0xff]
    %v58 = vld [vmem:[#allocation6 + $0x8] sm:$0xff]
    %v59 = vld [vmem:[%s0] sm:$0xf]
    %v60 = vld [vmem:[#allocation2] sm:$0x1]
    %62 = vset.pattern.permute.xlu0 0
    %63 = vperm.xlu0 %62, %v59
    %v64 = vpop.permute.xlu0 %63
    %v66 = vunpack.c.l.s4 839922192
    %v67 = vunpack.c.0.s8 %v66
    %v68 = vperm.slane %v64, %v67
    %v70 = vmul.f32 %v55, %v68
    %v71 = vmul.f32 %v56, %v68
    %74 = vst [vmem:[#allocation1] ss:$2 sm:$0xff] %v70
    %v75 = vld.sshfl [vmem:[#allocation1] sm:$0xff pattern:$0x75316420]
    %v76 = vld.sshfl [vmem:[#allocation1 + $0x8] sm:$0xff pattern:$0x75316420]
    %s77 = scalar_lea.vmem [#allocation1], 16
    %78 = vst [vmem:[%s77] ss:$2 sm:$0xff] %v71
    %v79 = vld.sshfl [vmem:[#allocation1 + $0x10] sm:$0xff pattern:$0x75316420]
    %v80 = vld.sshfl [vmem:[#allocation1 + $0x18] sm:$0xff pattern:$0x75316420]
    %vm85 = vcmask 1043456
    %v86 = vsel %vm85, %v75, 0.0
    %v87 = vrot.slane %v86, 4
    %v88 = vadd.f32 %v86, %v87
    %v89 = vrot.slane %v88, 2
    %v90 = vadd.f32 %v88, %v89
    %v91 = vrot.slane %v90, 1
    %v92 = vadd.f32 %v90, %v91
    %v93 = vsel %vm85, %v76, 0.0
    %v94 = vrot.slane %v93, 4
    %v95 = vadd.f32 %v93, %v94
    %v96 = vrot.slane %v95, 2
    %v97 = vadd.f32 %v95, %v96
    %v98 = vrot.slane %v97, 1
    %v99 = vadd.f32 %v97, %v98
    %v100 = vsel %vm85, %v79, 0.0
    %v101 = vrot.slane %v100, 4
    %v102 = vadd.f32 %v100, %v101
    %v103 = vrot.slane %v102, 2
    %v104 = vadd.f32 %v102, %v103
    %v105 = vrot.slane %v104, 1
    %v106 = vadd.f32 %v104, %v105
    %v107 = vsel %vm85, %v80, 0.0
    %v108 = vrot.slane %v107, 4
    %v109 = vadd.f32 %v107, %v108
    %v110 = vrot.slane %v109, 2
    %v111 = vadd.f32 %v109, %v110
    %v112 = vrot.slane %v111, 1
    %v113 = vadd.f32 %v111, %v112
    %v115 = vperm.slane %v60, 0
    %116 = vset.pattern.permute.xlu0 0
    %117 = vperm.xlu0 %116, %v115
    %v118 = vpop.permute.xlu0 %117
    %v120 = vadd.f32 %v92, %v118
    %v121 = vadd.f32 %v99, %v118
    %v122 = vadd.f32 %v106, %v118
    %v123 = vadd.f32 %v113, %v118
    %v124 = vmul.f32 %v57, %v68
    %v125 = vmul.f32 %v58, %v68
    %128 = vst [vmem:[#allocation1] ss:$2 sm:$0xff] %v124
    %v129 = vld.sshfl [vmem:[#allocation1] sm:$0xff pattern:$0x75316420]
    %v130 = vld.sshfl [vmem:[#allocation1 + $0x8] sm:$0xff pattern:$0x75316420]
    %s131 = scalar_lea.vmem [#allocation1], 16
    %132 = vst [vmem:[%s131] ss:$2 sm:$0xff] %v125
    %v133 = vld.sshfl [vmem:[#allocation1 + $0x10] sm:$0xff pattern:$0x75316420]
    %v134 = vld.sshfl [vmem:[#allocation1 + $0x18] sm:$0xff pattern:$0x75316420]
    %v139 = vsel %vm85, %v129, 0.0
    %v140 = vrot.slane %v139, 4
    %v141 = vadd.f32 %v139, %v140
    %v142 = vrot.slane %v141, 2
    %v143 = vadd.f32 %v141, %v142
    %v144 = vrot.slane %v143, 1
    %v145 = vadd.f32 %v143, %v144
    %v146 = vsel %vm85, %v130, 0.0
    %v147 = vrot.slane %v146, 4
    %v148 = vadd.f32 %v146, %v147
    %v149 = vrot.slane %v148, 2
    %v150 = vadd.f32 %v148, %v149
    %v151 = vrot.slane %v150, 1
    %v152 = vadd.f32 %v150, %v151
    %v153 = vsel %vm85, %v133, 0.0
    %v154 = vrot.slane %v153, 4
    %v155 = vadd.f32 %v153, %v154
    %v156 = vrot.slane %v155, 2
    %v157 = vadd.f32 %v155, %v156
    %v158 = vrot.slane %v157, 1
    %v159 = vadd.f32 %v157, %v158
    %v160 = vsel %vm85, %v134, 0.0
    %v161 = vrot.slane %v160, 4
    %v162 = vadd.f32 %v160, %v161
    %v163 = vrot.slane %v162, 2
    %v164 = vadd.f32 %v162, %v163
    %v165 = vrot.slane %v164, 1
    %v166 = vadd.f32 %v164, %v165
    %v167 = vadd.f32 %v145, %v118
    %v168 = vadd.f32 %v152, %v118
    %v169 = vadd.f32 %v159, %v118
    %v170 = vadd.f32 %v166, %v118
    %vm175 = vcmask 1041409
    %v176 = vsel %vm175, %v122, %v120
    %v177 = vsel %vm175, %v123, %v121
    %vm180 = vcmask 1041408
    %v181 = vsel %vm180, %v176, -inf
    %v182 = vsel %vm180, %v177, -inf
    %v183 = vmax.f32 %v181, %v182
    %184 = vmax.xlane.f32.xlu0 %v183
    %v185 = vpop.xlane.xlu0 %184
    %v187 = vrot.slane %v185, 1
    %v190 = vsub.f32 %v120, %v185
    %v191 = vsub.f32 %v121, %v185
    %v192 = vsub.f32 %v122, %v187
    %v193 = vsub.f32 %v123, %v187
    %v194 = vmul.f32 %v190, 1.442695
    %v195 = vpow.pop %v194
    %v196 = vmul.f32 %v191, 1.442695
    %v197 = vpow.pop %v196
    %v198 = vmul.f32 %v192, 1.442695
    %v199 = vpow.pop %v198
    %v200 = vmul.f32 %v193, 1.442695
    %v201 = vpow.pop %v200
    %v206 = vrot.slane %v199, 7
    %v207 = vsel %vm175, %v206, %v195
    %v208 = vrot.slane %v201, 7
    %v209 = vsel %vm175, %v208, %v197
    %v212 = vsel %vm180, %v207, 0.0
    %v213 = vsel %vm180, %v209, 0.0
    %v214 = vadd.f32 %v212, %v213
    %215 = vadd.xlane.f32.xlu0 %v214
    %v216 = vpop.xlane.xlu0 %215
    %v217 = vrcp.pop %v216
    %v219 = vrot.slane %v217, 1
    %v222 = vmul.f32 %v195, %v217
    %v223 = vmul.f32 %v197, %v217
    %v224 = vmul.f32 %v199, %v219
    %v225 = vmul.f32 %v201, %v219
    %v230 = vsel %vm175, %v169, %v167
    %v231 = vsel %vm175, %v170, %v168
    %v234 = vsel %vm180, %v230, -inf
    %v235 = vsel %vm180, %v231, -inf
    %v236 = vmax.f32 %v234, %v235
    %237 = vmax.xlane.f32.xlu0 %v236
    %v238 = vpop.xlane.xlu0 %237
    %v240 = vrot.slane %v238, 1
    %v243 = vsub.f32 %v167, %v238
    %v244 = vsub.f32 %v168, %v238
    %v245 = vsub.f32 %v169, %v240
    %v246 = vsub.f32 %v170, %v240
    %v247 = vmul.f32 %v243, 1.442695
    %v248 = vpow.pop %v247
    %v249 = vmul.f32 %v244, 1.442695
    %v250 = vpow.pop %v249
    %v251 = vmul.f32 %v245, 1.442695
    %v252 = vpow.pop %v251
    %v253 = vmul.f32 %v246, 1.442695
    %v254 = vpow.pop %v253
    %v259 = vrot.slane %v252, 7
    %v260 = vsel %vm175, %v259, %v248
    %v261 = vrot.slane %v254, 7
    %v262 = vsel %vm175, %v261, %v250
    %v265 = vsel %vm180, %v260, 0.0
    %v266 = vsel %vm180, %v262, 0.0
    %v267 = vadd.f32 %v265, %v266
    %268 = vadd.xlane.f32.xlu0 %v267
    %v269 = vpop.xlane.xlu0 %268
    %v270 = vrcp.pop %v269
    %v272 = vrot.slane %v270, 1
    %v275 = vmul.f32 %v248, %v270
    %v276 = vmul.f32 %v250, %v270
    %v277 = vmul.f32 %v252, %v272
    %v278 = vmul.f32 %v254, %v272
    %v279 = vsub.f32 %v222, %v275
    %v280 = vsub.f32 %v223, %v276
    %v281 = vsub.f32 %v224, %v277
    %v282 = vsub.f32 %v225, %v278
    %v283 = vmul.f32 %v279, %v279
    %v284 = vmul.f32 %v280, %v280
    %v285 = vmul.f32 %v281, %v281
    %v286 = vmul.f32 %v282, %v282
    %v291 = vrot.slane %v285, 7
    %v292 = vsel %vm175, %v291, %v283
    %v293 = vrot.slane %v286, 7
    %v294 = vsel %vm175, %v293, %v284
    %v297 = vsel %vm180, %v292, 0.0
    %v298 = vsel %vm180, %v294, 0.0
    %v299 = vadd.f32 %v297, %v298
    %300 = vadd.xlane.f32.xlu0 %v299
    %v301 = vpop.xlane.xlu0 %300
    %vm302 = vcmp.lt.f32.partialorder %v301, %v301
    %v303 = vsel %vm302, 1, 0
    %v304 = vperm.slane %v303, 0
    %v305 = vperm.slane %v303, 1
    %vm306 = vcmp.ne.s32.totalorder %v304, 0
    %vm307 = vcmp.ne.s32.totalorder %v305, 0
    %v308 = vsel %vm306, 1, 0
    %v309 = vsel %vm307, 1, 0
    %vm310 = vcmp.eq.s32.totalorder %v308, 1
    %vm311 = vcmp.eq.s32.totalorder %v309, 1
    %v312 = vsel %vm310, %v57, %v55
    %v313 = vsel %vm311, %v58, %v56
    %314 = vst [vmem:[#allocation8] sm:$0xff] %v312
    %315 = vst [vmem:[#allocation8 + $0x8] sm:$0xff] %v313
    %v316 = vsel %vm310, %v55, %v57
    %v317 = vsel %vm311, %v56, %v58
    %318 = vst [vmem:[#allocation9] sm:$0xff] %v316
    %319 = vst [vmem:[#allocation9 + $0x8] sm:$0xff] %v317
    // Predicated region
    $region26: #{tpu_custom_call.1} parent=1 // pred_check
      _
    $region27: #{tpu_custom_call.1} parent=1 // pred_check_branch
      %321 = sbr.rel (0) target = $region29
    $region28: #{tpu_custom_call.1} parent=1 // pred_region
      %323 = vsyncadd [#allocation5], 0
      %s324 = sshll.u32 [#allocation8], 4
      %s325 = int_to_ptr.vmem [resolvable:$true] %s324
      %s326 = sshll.u32 %s4, 4
      %s327 = int_to_ptr.hbm [resolvable:$true] %s326
      %332 = dma.vmem_to_hbm [thread:$0]  %s325, 256, %s327, [#allocation5], 128, 128, 8
    $region29: #{tpu_custom_call.1} parent=1 // pred_fallthru
      _
    // Predicated region
    $region30: #{tpu_custom_call.1} parent=1 // pred_check
      _
    $region31: #{tpu_custom_call.1} parent=1 // pred_check_branch
      %334 = sbr.rel (0) target = $region33
    $region32: #{tpu_custom_call.1} parent=1 // pred_region
      %336 = vsyncadd [#allocation10], 0
      %s337 = sshll.u32 [#allocation9], 4
      %s338 = int_to_ptr.vmem [resolvable:$true] %s337
      %s339 = sshll.u32 %s5, 4
      %s340 = int_to_ptr.hbm [resolvable:$true] %s339
      %345 = dma.vmem_to_hbm [thread:$0]  %s338, 256, %s340, [#allocation10], 128, 128, 8
    $region33: #{tpu_custom_call.1} parent=1 // pred_fallthru
      _
    // Predicated region
    $region34: #{tpu_custom_call.1} parent=1 // pred_check
      _
    $region35: #{tpu_custom_call.1} parent=1 // pred_check_branch
      %347 = sbr.rel (0) target = $region37
    $region36: #{tpu_custom_call.1} parent=1 // pred_region
      %349 = dma.done [#allocation5], 256
    $region37: #{tpu_custom_call.1} parent=1 // pred_fallthru
      _
    // Predicated region
    $region38: #{tpu_custom_call.1} parent=1 // pred_check
      _
    $region39: #{tpu_custom_call.1} parent=1 // pred_check_branch
      %351 = sbr.rel (0) target = $region41
    $region40: #{tpu_custom_call.1} parent=1 // pred_region
      %353 = dma.done [#allocation10], 256
    $region41: #{tpu_custom_call.1} parent=1 // pred_fallthru
      _
    %354 = vsyncpa [#allocation4], 1
    %355 = vsyncpa [#allocation7], 1
    %356 = vsyncpa [#allocation5], 1
    %357 = vsyncpa [#allocation10], 1

</llo_original>
